<compile_context>
chip_gen: v7x
topology: tpu7x:2x2x1
jax: 0.10.0
libtpu: 0.0.40
codegen_flags: <defaults>
</compile_context>

<pallas_src>
import functools
import math

import jax
import jax.numpy as jnp
from jax import lax
from jax.experimental import pallas as pl
from jax.experimental.pallas import tpu as pltpu

_TWO_PI = 2.0 * math.pi
_LANE = 128
_SUBLANE = 8


def _periodic_kernel(x_ref, coef_ref, out_ref, *, d_embedding, d_half):
    # x_ref   : (tb, F_pad)      batch tile of the input (K-padded)
    # coef_ref: (F_pad, FD_pad)  block-diagonal, 2*pi-folded coefficients (f32)
    # out_ref : (tb, FD_pad)     lane-dense output tile
    x = x_ref[...].astype(jnp.float32)
    coef_bd = coef_ref[...]
    # Tiny MXU matmul; angles land directly in the lane-dense store layout.
    angles = jnp.dot(x, coef_bd, preferred_element_type=jnp.float32)  # (tb, FD_pad)
    # First d_half lanes of each feature's d_embedding block get cos, the
    # second d_half lanes get sin (matches torch.cat([cos, sin], -1)).
    lane = lax.broadcasted_iota(jnp.int32, angles.shape, 1)
    cos_mask = (lane % d_embedding) < d_half
    out = jnp.where(cos_mask, jnp.cos(angles), jnp.sin(angles))
    out_ref[...] = out.astype(out_ref.dtype)  # single unmasked full-lane store


def _build_block_diag_coefficients(coefficients, f_pad, fd_pad):
    """(F, DH) -> (f_pad, fd_pad) block-diagonal matrix with 2*pi folded in and
    each angle replicated into both its cos and sin lane positions."""
    F, DH = coefficients.shape
    D = 2 * DH
    scaled = (_TWO_PI * coefficients).astype(jnp.float32)        # (F, DH)
    per_feature = jnp.concatenate([scaled, scaled], axis=-1)     # (F, D)
    eye = jnp.eye(F, dtype=jnp.float32)                          # (F, F)
    coef_bd = (eye[:, :, None] * per_feature[None, :, :]).reshape(F, F * D)
    coef_bd = jnp.pad(coef_bd, ((0, f_pad - F), (0, fd_pad - F * D)))
    return coef_bd


def periodic_embeddings(x, coefficients, *, tb=None, out_dtype=None):
    """x: (B, F), coefficients: (F, D/2)  ->  (B, F, D)."""
    B, F = x.shape
    F2, DH = coefficients.shape
    assert F == F2, "coefficients first dim must equal n_features"
    D = 2 * DH
    FD = F * D
    FD_pad = pl.cdiv(FD, _LANE) * _LANE          # keep the store unmasked
    F_pad = pl.cdiv(F, _SUBLANE) * _SUBLANE      # sublane-aligned contraction dim

    if out_dtype is None:
        out_dtype = x.dtype  # pass jnp.bfloat16 in production to halve writeback

    # Batch-tile size: multiple of 8 sublanes; large enough to amortize the
    # ~0.35us fixed grid-step overhead, small enough that the double-buffered
    # footprint (~8 MiB at tb=4096) fits every generation's scoped VMEM.
    if tb is None:
        tb = 4096
    tb = min(tb, B)
    if tb < B:
        tb = max(_SUBLANE, (tb // _SUBLANE) * _SUBLANE)
    # (tb == B is always legal as a full-extent block, even if B < 8.)

    grid = (pl.cdiv(B, tb),)

    # K-pad the input once in the wrapper (tiny), keeping the matmul operands
    # cleanly (8,128)-tile aligned.
    x_pad = jnp.pad(x, ((0, 0), (0, F_pad - F))) if F_pad != F else x
    coef_bd = _build_block_diag_coefficients(coefficients, F_pad, FD_pad)

    out_bytes = jnp.dtype(out_dtype).itemsize
    cost = pl.CostEstimate(
        flops=2 * B * F_pad * FD_pad,
        transcendentals=2 * B * FD_pad,
        bytes_accessed=(B * F_pad * x_pad.dtype.itemsize
                        + F_pad * FD_pad * 4
                        + B * FD_pad * out_bytes),
    )

    kernel = functools.partial(_periodic_kernel, d_embedding=D, d_half=DH)

    out2d = pl.pallas_call(
        kernel,
        out_shape=jax.ShapeDtypeStruct((B, FD_pad), out_dtype),
        grid_spec=pltpu.PrefetchScalarGridSpec(
            num_scalar_prefetch=0,
            grid=grid,
            in_specs=[
                # batch-tiled input
                pl.BlockSpec((tb, F_pad), lambda i: (i, 0)),
                # expanded coefficients: same full block every step (resident)
                pl.BlockSpec((F_pad, FD_pad), lambda i: (0, 0)),
            ],
            # lane-dense 2D output block; FD_pad multiple of 128 -> unmasked vst
            out_specs=pl.BlockSpec((tb, FD_pad), lambda i: (i, 0)),
        ),
        compiler_params=pltpu.CompilerParams(
            dimension_semantics=("parallel",),
        ),
        cost_estimate=cost,
    )(x_pad, coef_bd)

    if FD_pad != FD:
        out2d = out2d[:, :FD]
    # Free, contiguous row-major reshape back to the module's 3D output.
    return out2d.reshape(B, F, D)


if __name__ == "__main__":
    # Module config: n_features=4, d_embedding=32 (even), sigma=0.1; batch=16.
    B = 16
    n_features = 4
    d_embedding = 32
    sigma = 0.1

    key = jax.random.PRNGKey(0)
    kx, kc = jax.random.split(key)

    x = jax.random.normal(kx, (B, n_features), dtype=jnp.float32)
    # Deterministic init matching nn.init.normal_(coefficients, 0.0, sigma)
    coefficients = sigma * jax.random.normal(
        kc, (n_features, d_embedding // 2), dtype=jnp.float32
    )

    # tb=8 -> grid=(2,): exercises batch tiling / pipelining even at toy size.
    out = periodic_embeddings(x, coefficients, tb=8)
    out = jax.block_until_ready(out)

    # Pure-JAX reference for correctness
    angles = _TWO_PI * coefficients[None] * x[..., None]
    ref = jnp.concatenate([jnp.cos(angles), jnp.sin(angles)], axis=-1)

    assert out.shape == (B, n_features, d_embedding), out.shape
    assert jnp.allclose(out, ref, atol=1e-5, rtol=1e-5), float(
        jnp.max(jnp.abs(out - ref))
    )

    print("KERNEL_OK")
</pallas_src>

<mosaic_0001>
module attributes {stable_mosaic.version = 11 : i64} {
  func.func @_periodic_kernel(%arg0: i32, %arg1: memref<8x8xf32, #tpu.memory_space<vmem>>, %arg2: memref<8x128xf32, #tpu.memory_space<vmem>>, %arg3: memref<8x128xf32, #tpu.memory_space<vmem>>) attributes {dimension_semantics = [#tpu.dimension_semantics<parallel>], iteration_bounds = array<i64: 2>, scalar_prefetch = 0 : i64, scratch_operands = 0 : i64, tpu.core_type = #tpu.core_type<tc>, window_params = [{transform_indices = @transform_0, window_bounds = array<i64: 8, 8>}, {pipeline_mode = #tpu.pipeline_mode<synchronous>, transform_indices = @transform_1, window_bounds = array<i64: 8, 128>}, {transform_indices = @transform_2, window_bounds = array<i64: 8, 128>}]} {
    %c0 = arith.constant 0 : index
    %c0_0 = arith.constant 0 : index
    %0 = vector.load %arg1[%c0, %c0_0] : memref<8x8xf32, #tpu.memory_space<vmem>>, vector<8x8xf32>
    %c0_1 = arith.constant 0 : index
    %c0_2 = arith.constant 0 : index
    %1 = vector.load %arg2[%c0_1, %c0_2] : memref<8x128xf32, #tpu.memory_space<vmem>>, vector<8x128xf32>
    %cst = arith.constant dense<0.000000e+00> : vector<8x128xf32>
    %2 = tpu.matmul %0, %1, %cst {dimension_numbers = #tpu.dot_dimension_numbers<[1], [0], [0], [1], [0, 0, 1, 1], [], []>} : vector<8x8xf32>, vector<8x128xf32>, vector<8x128xf32> -> vector<8x128xf32>
    %3 = tpu.iota {dimensions = array<i32: 1>} : vector<8x128xi32>
    %c32_i32 = arith.constant 32 : i32
    %c0_i32 = arith.constant 0 : i32
    %4 = arith.cmpi eq, %c32_i32, %c0_i32 : i32
    %c1_i32 = arith.constant 1 : i32
    %5 = arith.select %4, %c1_i32, %c32_i32 : i32
    %6 = vector.broadcast %5 : i32 to vector<8x128xi32>
    %7 = arith.remsi %3, %6 : vector<8x128xi32>
    %c0_i32_3 = arith.constant 0 : i32
    %8 = vector.broadcast %c0_i32_3 : i32 to vector<8x128xi32>
    %9 = arith.cmpi ne, %7, %8 : vector<8x128xi32>
    %c0_i32_4 = arith.constant 0 : i32
    %10 = vector.broadcast %c0_i32_4 : i32 to vector<8x128xi32>
    %11 = arith.cmpi slt, %7, %10 : vector<8x128xi32>
    %c0_i32_5 = arith.constant 0 : i32
    %12 = arith.cmpi slt, %5, %c0_i32_5 : i32
    %13 = vector.broadcast %12 : i1 to vector<8x128xi1>
    %14 = vector.broadcast %13 : vector<8x128xi1> to vector<8x128xi1>
    %15 = arith.xori %11, %14 : vector<8x128xi1>
    %16 = arith.andi %15, %9 : vector<8x128xi1>
    %17 = vector.broadcast %5 : i32 to vector<8x128xi32>
    %18 = arith.addi %7, %17 : vector<8x128xi32>
    %19 = arith.select %16, %18, %7 : vector<8x128xi1>, vector<8x128xi32>
    %c16_i32 = arith.constant 16 : i32
    %20 = vector.broadcast %c16_i32 : i32 to vector<8x128xi32>
    %21 = arith.cmpi slt, %19, %20 : vector<8x128xi32>
    %22 = math.cos %2 : vector<8x128xf32>
    %23 = math.sin %2 : vector<8x128xf32>
    %24 = arith.select %21, %22, %23 : vector<8x128xi1>, vector<8x128xf32>
    %c0_6 = arith.constant 0 : index
    %c0_7 = arith.constant 0 : index
    %25 = vector.load %arg3[%c0_6, %c0_7] : memref<8x128xf32, #tpu.memory_space<vmem>>, vector<8x128xf32>
    tpu.vector_store %arg3[%c0_6, %c0_7], %24 {strides = array<i32>} : memref<8x128xf32, #tpu.memory_space<vmem>>, vector<8x128xf32>,
    return
  }
  func.func @transform_0(%arg0: i32) -> (i32, i32) {
    %c0_i32 = arith.constant 0 : i32
    %c0_i32_0 = arith.constant 0 : i32
    return %arg0, %c0_i32 : i32, i32
  }
  func.func @transform_1(%arg0: i32) -> (i32, i32) {
    %c0_i32 = arith.constant 0 : i32
    %c0_i32_0 = arith.constant 0 : i32
    %c0_i32_1 = arith.constant 0 : i32
    return %c0_i32, %c0_i32_0 : i32, i32
  }
  func.func @transform_2(%arg0: i32) -> (i32, i32) {
    %c0_i32 = arith.constant 0 : i32
    %c0_i32_0 = arith.constant 0 : i32
    return %arg0, %c0_i32 : i32, i32
  }
}

</mosaic_0001>

<llo_original>
// kernel: tpu_custom_call.1
$region0: #{tpu_custom_call.1}
  #allocation0 [shape = 'u32[]', space=smem, size = 0x4, offset = 0x4, fixed_abs, tag = 'smem constant byte address 0x4 - core index']
  #allocation1 [shape = 'u32[144,128]{1,0:T(1,128)}', space=vmem, size = 0x12000, scoped, tag = 'internal scratch']
  %s0 = inlined_call_operand.vmem [shape: f32[16,8], index: 0, kind: input, shape index: {}]
  %s1 = inlined_call_operand.vmem [shape: f32[8,128], index: 1, kind: input, shape index: {}]
  %s2 = inlined_call_operand.hbm [shape: f32[16,128], index: 2, kind: output, shape index: {}]
  %s3 = sld [smem:[#allocation0]]
  $region41: #{tpu_custom_call.1} parent=0
    _
  %s5 = ssub.s32 1, %s3
  %s6 = scalar_select 0, %s5, %s3
  $region1: #{tpu_custom_call.1} parent=0
    #allocation2 [shape = 'u8[8192]{0}', space=vmem, size = 0x2000, scoped, tag = 'output window, operand 0']
    #allocation3 [shape = 's32[2]{0}', space=sflag, size = 0x8, scoped, tag = 'scoped memory for tpu_custom_call.1']
    %7 = vsyncpa [#allocation3], 0
    %s8 = scalar_lea.sflag [#allocation3], 1
    %9 = vsyncpa %s8, 0
    loop: start=0, step=1, limit=4
    $region2: #{tpu_custom_call.1} parent=1 // loop_pre_header
      _
    $region3: #{tpu_custom_call.1} parent=1 // loop_header
      %s11 = sphi 0, %s15
      %p12 = scmp.ge.s32.totalorder %s11, 4
      %s21 = sphi 0, %s23
      %s24 = sphi 0, %s21
      %s25 = sphi 0, %s24
      %s41 = sphi 0, %s25
      %s45 = sphi 0, %s45
      %s47 = sphi 0, %s45
      %s48 = sphi 0, %s47
      %s62 = sphi 0, %s48
      %s68 = sphi 0, %s70
      %s71 = sphi 0, %s68
      %s72 = sphi 0, %s71
      %s88 = sphi 0, %s72
    $region4: #{tpu_custom_call.1} parent=1 // loop_header_branch
      %14 = sbr.rel (%p12) target = $region8
    $region5: #{tpu_custom_call.1} parent=1 // loop_body
      %s16 = ssub.s32 %s11, 1
      %s17 = ssub.s32 %s11, 2
      %s18 = sadd.s32 %s11, 1
      %s19 = ssub.s32 %s11, %s18
      %p20 = scmp.eq.s32.totalorder %s19, 0
      %s22 = sadd.s32 %s21, 1
      %s23 = scalar_select %p20, %s21, %s22
      %p26 = pneg %p20
      %p27 = scmp.eq.s32.totalorder %s11, 1
      %p28 = por %p26, %p27
      %p29 = scmp.ne.s32.totalorder %s21, %s24
      %p30 = scmp.eq.s32.totalorder %s11, 0
      %p31 = por %p29, %p30
      %p32 = scmp.ne.s32.totalorder %s21, %s24
      %p33 = scmp.eq.s32.totalorder %s16, 1
      %p34 = por %p32, %p33
      %p35 = scmp.ne.s32.totalorder %s24, %s25
      %p36 = scmp.eq.s32.totalorder %s16, 0
      %p37 = por %p35, %p36
      %p38 = scmp.ne.s32.totalorder %s24, %s25
      %p39 = scmp.eq.s32.totalorder %s17, 1
      %p40 = por %p38, %p39
      %p42 = scmp.ne.s32.totalorder %s25, %s41
      %p43 = scmp.eq.s32.totalorder %s17, 0
      %p44 = por %p42, %p43
      %s46 = sadd.s32 %s45, 1
      %p49 = scmp.eq.s32.totalorder %s11, 1
      %p50 = scmp.ne.s32.totalorder %s45, %s47
      %p51 = scmp.eq.s32.totalorder %s11, 0
      %p52 = por %p50, %p51
      %p53 = scmp.ne.s32.totalorder %s45, %s47
      %p54 = scmp.eq.s32.totalorder %s16, 1
      %p55 = por %p53, %p54
      %p56 = scmp.ne.s32.totalorder %s47, %s48
      %p57 = scmp.eq.s32.totalorder %s16, 0
      %p58 = por %p56, %p57
      %p59 = scmp.ne.s32.totalorder %s47, %s48
      %p60 = scmp.eq.s32.totalorder %s17, 1
      %p61 = por %p59, %p60
      %p63 = scmp.ne.s32.totalorder %s48, %s62
      %p64 = scmp.eq.s32.totalorder %s17, 0
      %p65 = por %p63, %p64
      %s66 = ssub.s32 %s11, %s18
      %p67 = scmp.eq.s32.totalorder %s66, 0
      %s69 = sadd.s32 %s68, 1
      %s70 = scalar_select %p67, %s68, %s69
      %p73 = pneg %p67
      %p74 = scmp.eq.s32.totalorder %s11, 1
      %p75 = por %p73, %p74
      %p76 = scmp.ne.s32.totalorder %s68, %s71
      %p77 = scmp.eq.s32.totalorder %s11, 0
      %p78 = por %p76, %p77
      %p79 = scmp.ne.s32.totalorder %s68, %s71
      %p80 = scmp.eq.s32.totalorder %s16, 1
      %p81 = por %p79, %p80
      %p82 = scmp.ne.s32.totalorder %s71, %s72
      %p83 = scmp.eq.s32.totalorder %s16, 0
      %p84 = por %p82, %p83
      %p85 = scmp.ne.s32.totalorder %s71, %s72
      %p86 = scmp.eq.s32.totalorder %s17, 1
      %p87 = por %p85, %p86
      %p89 = scmp.ne.s32.totalorder %s72, %s88
      %p90 = scmp.eq.s32.totalorder %s17, 0
      %p91 = por %p89, %p90
      %p92 = scmp.le.s32.totalorder 1, %s11
      %p93 = scmp.lt.s32.totalorder %s11, 3
      %p94 = pnand %p92, %p93
      %p95 = pneg %p94
      // Predicated region
      $region9: #{tpu_custom_call.1} parent=5 // pred_check
        _
      $region10: #{tpu_custom_call.1} parent=5 // pred_check_branch
        %97 = sbr.rel (%p94) target = $region12
      $region11: #{tpu_custom_call.1} parent=5 // pred_region
        %s98 = ssub.s32 %s11, 1
        // Predicated region
        $region13: #{tpu_custom_call.1} parent=11 // pred_check
          %p99 = pneg %p58
        $region14: #{tpu_custom_call.1} parent=11 // pred_check_branch
          %101 = sbr.rel (%p99) target = $region16
        $region15: #{tpu_custom_call.1} parent=11 // pred_region
          _
        $region16: #{tpu_custom_call.1} parent=11 // pred_fallthru
          _
      $region12: #{tpu_custom_call.1} parent=5 // pred_fallthru
        _
      %p102 = scmp.lt.s32.totalorder %s11, 2
      // Predicated region
      $region17: #{tpu_custom_call.1} parent=5 // pred_check
        %p103 = pneg %p102
      $region18: #{tpu_custom_call.1} parent=5 // pred_check_branch
        %105 = sbr.rel (%p103) target = $region20
      $region19: #{tpu_custom_call.1} parent=5 // pred_region
        // Predicated region
        $region21: #{tpu_custom_call.1} parent=19 // pred_check
          %p106 = pneg %p31
        $region22: #{tpu_custom_call.1} parent=19 // pred_check_branch
          %108 = sbr.rel (%p106) target = $region24
        $region23: #{tpu_custom_call.1} parent=19 // pred_region
          %p109 = scmp.lt.s32.totalorder %s11, 1
          %s110 = scalar_select %p109, %s11, 1
          %s111 = smul.addr %s110, 8
          %s112 = scalar_lea.vmem %s0, %s111
        $region24: #{tpu_custom_call.1} parent=19 // pred_fallthru
          _
      $region20: #{tpu_custom_call.1} parent=5 // pred_fallthru
        _
      %p113 = scmp.le.s32.totalorder 1, %s11
      %p114 = scmp.lt.s32.totalorder %s11, 3
      %p115 = pnand %p113, %p114
      %p116 = pneg %p115
      // Predicated region
      $region25: #{tpu_custom_call.1} parent=5 // pred_check
        _
      $region26: #{tpu_custom_call.1} parent=5 // pred_check_branch
        %118 = sbr.rel (%p115) target = $region28
      $region27: #{tpu_custom_call.1} parent=5 // pred_region
        %s119 = ssub.s32 %s11, 1
        %p120 = scmp.lt.s32.totalorder %s16, 1
        %s121 = scalar_select %p120, %s16, 1
        %s122 = smul.addr %s121, 8
        %s123 = scalar_lea.vmem %s0, %s122
        %p124 = pneg %p37
        %p125 = pneg %p34
        %p126 = pneg %p58
        %p127 = pneg %p55
        %p128 = pneg %p84
        %p129 = pneg %p81
        %s130 = sand.u32 %s71, 1
        %s131 = scalar_lea.sflag [#allocation3], %s130
        %s132 = sand.u32 %s71, 1
        %s133 = smul.addr %s132, 8
        %s134 = scalar_lea.vmem [#allocation2], %s133
        %p135 = scmp.lt.s32.totalorder %s16, 1
        %s136 = scalar_select %p135, %s16, 1
        %s137 = smul.addr %s136, 8
        %s138 = scalar_lea.vmem %s0, %s137
        %v139 = vld [vmem:[%s138] sm:$0xff]
        %v140 = vld [vmem:[%s1] sm:$0xff]
        %vm141 = vcmask 64512
        %v143 = vsel %vm141, %v139, 0
        %145 = vmatprep.subr.mxu0 0.0
        %146 = vmatpush1.msra.mxu0 %v140
        %147 = vmatprep.subr.mxu0 0.0
        %148 = vmatpush1.msra.mxu0 0.0
        %149 = vmatprep.subr.mxu0 0.0
        %150 = vmatpush1.msra.mxu0 0.0
        %151 = vmatprep.subr.mxu0 0.0
        %152 = vmatpush1.msra.mxu0 0.0
        %153 = vmatprep.subr.mxu0 0.0
        %154 = vmatpush1.msra.mxu0 0.0
        %155 = vmatprep.subr.mxu0 0.0
        %156 = vmatpush1.msra.mxu0 0.0
        %157 = vmatprep.subr.mxu0 0.0
        %158 = vmatpush1.msra.mxu0 0.0
        %159 = vmatprep.subr.mxu0 0.0
        %160 = vmatpush1.msra.mxu0 0.0
        %161 = vmatprep.subr.mxu0 0.0
        %162 = vmatpush1.msra.mxu0 0.0
        %163 = vmatprep.subr.mxu0 0.0
        %164 = vmatpush1.msra.mxu0 0.0
        %165 = vmatprep.subr.mxu0 0.0
        %166 = vmatpush1.msra.mxu0 0.0
        %167 = vmatprep.subr.mxu0 0.0
        %168 = vmatpush1.msra.mxu0 0.0
        %169 = vmatprep.subr.mxu0 0.0
        %170 = vmatpush1.msra.mxu0 0.0
        %171 = vmatprep.subr.mxu0 0.0
        %172 = vmatpush1.msra.mxu0 0.0
        %173 = vmatprep.subr.mxu0 0.0
        %174 = vmatpush1.msra.mxu0 0.0
        %175 = vmatprep.subr.mxu0 0.0
        %176 = vmatpush1.msra.mxu0 0.0
        %177 = vmatprep.subr.mxu0 0.0
        %178 = vmatpush1.msra.mxu0 0.0
        %179 = vmatprep.subr.mxu0 0.0
        %180 = vmatpush1.msra.mxu0 0.0
        %181 = vmatprep.subr.mxu0 0.0
        %182 = vmatpush1.msra.mxu0 0.0
        %183 = vmatprep.subr.mxu0 0.0
        %184 = vmatpush1.msra.mxu0 0.0
        %185 = vmatprep.subr.mxu0 0.0
        %186 = vmatpush1.msra.mxu0 0.0
        %187 = vmatprep.subr.mxu0 0.0
        %188 = vmatpush1.msra.mxu0 0.0
        %189 = vmatprep.subr.mxu0 0.0
        %190 = vmatpush1.msra.mxu0 0.0
        %191 = vmatprep.subr.mxu0 0.0
        %192 = vmatpush1.msra.mxu0 0.0
        %193 = vmatprep.subr.mxu0 0.0
        %194 = vmatpush1.msra.mxu0 0.0
        %195 = vmatprep.subr.mxu0 0.0
        %196 = vmatpush1.msra.mxu0 0.0
        %197 = vmatprep.subr.mxu0 0.0
        %198 = vmatpush1.msra.mxu0 0.0
        %199 = vmatprep.subr.mxu0 0.0
        %200 = vmatpush1.msra.mxu0 0.0
        %201 = vmatprep.subr.mxu0 0.0
        %202 = vmatpush1.msra.mxu0 0.0
        %203 = vmatprep.subr.mxu0 0.0
        %204 = vmatpush1.msra.mxu0 0.0
        %205 = vmatprep.subr.mxu0 0.0
        %206 = vmatpush1.msra.mxu0 0.0
        %207 = vmatprep.subr.mxu0 0.0
        %208 = vmatpush1.msra.mxu0 0.0
        %209 = vmatprep.mubr.f32.mxu0 0.0
        %210 = vmatmul.mubr.f32.gmra.mrb[0].mxu0 %v143
        %v211 = vpop.f32.mrb[0].mxu0
        %v212 = vadd.f32 0.0, %v211
        %v213 = vpop.f32.mrb[0].mxu0
        %214 = vdwg.mxu0
        %v215 = vlaneseq
        %v216 = vand.u32 %v215, 127
        %vm217 = vcmp.lt.s32.totalorder %v216, 0
        %v218 = vsub.s32 0, %v216
        %v219 = vsel %vm217, %v218, %v216
        %v220 = vshrl.u32 %v219, 5
        %v221 = vand.u32 %v219, 31
        %v222 = vsub.s32 0, %v221
        %v223 = vsel %vm217, %v222, %v221
        %vm224 = vcmp.ne.s32.totalorder %v223, 0
        %vm225 = vcmp.lt.s32.totalorder %v223, 0
        %vm226 = vmand %vm225, %vm224
        %v227 = vadd.s32 %v223, 32
        %v228 = vsel %vm226, %v227, %v223
        %vm229 = vcmp.lt.s32.totalorder %v228, 16
        %v230 = vand.u32 2147483647, %v212
        %vm231 = vcmp.le.f32.partialorder %v230, 0.7853982
        %vm232 = vcmp.lt.s32.totalorder %v212, 0
        %v233 = vand.u32 %v212, 2139095040
        %v234 = vshrl.u32 %v233, 23
        %v235 = vsub.s32 %v234, 127
        %v236 = vand.u32 2147483647, %v212
        %v237 = vand.u32 %v236, 8388607
        %v238 = vor.u32 %v237, 8388608
        %v239 = vsub.s32 0, %v238
        %v240 = vadd.s32 %v235, 1
        %vm241 = vcmp.gt.s32.totalorder %v240, 0
        %v242 = vsel %vm241, %v240, 0
        %v243 = vshrl.u32 %v242, 5
        %v244 = vand.u32 %v242, 31
        %v245 = vsub.s32 32, %v244
        %v246 = vshrl.u32 683565275, %v245
        %v247 = vshll.u32 683565275, %v244
        %v248 = vshrl.u32 2475754826, %v245
        %v249 = vor.u32 %v247, %v248
        %v250 = vshll.u32 2475754826, %v244
        %v251 = vshrl.u32 2131351028, %v245
        %v252 = vor.u32 %v250, %v251
        %v253 = vshll.u32 2131351028, %v244
        %v254 = vshrl.u32 2102212464, %v245
        %v255 = vor.u32 %v253, %v254
        %v256 = vshll.u32 2102212464, %v244
        %v257 = vshrl.u32 920167782, %v245
        %v258 = vor.u32 %v256, %v257
        %v259 = vshll.u32 920167782, %v244
        %v260 = vshrl.u32 1326507024, %v245
        %v261 = vor.u32 %v259, %v260
        %vm262 = vcmp.lt.s32.totalorder %v243, 1
        %vm263 = vcmp.lt.s32.totalorder %v243, 2
        %vm264 = vcmp.lt.s32.totalorder %v243, 3
        %vm265 = vcmp.lt.s32.totalorder %v243, 4
        %v266 = vsel %vm262, %v246, %v249
        %v267 = vsel %vm265, %v255, 2102212464
        %v268 = vsel %vm264, %v252, %v267
        %v269 = vsel %vm263, %v266, %v268
        %v270 = vsel %vm262, %v249, %v252
        %v271 = vsel %vm265, %v258, 920167782
        %v272 = vsel %vm264, %v255, %v271
        %v273 = vsel %vm263, %v270, %v272
        %v274 = vsel %vm262, %v252, %v255
        %v275 = vsel %vm265, %v261, 1326507024
        %v276 = vsel %vm264, %v258, %v275
        %v277 = vsel %vm263, %v274, %v276
        %v278 = vshll.u32 %v238, 8
        %v279 = vmul.u32.u64.compose %v278, %v277
        %v280 = vextract.low.u32 %v279
        %v281 = vextract.high.u32 %v279
        %v282 = vmul.u32.u64.compose %v278, %v273
        %v283 = vextract.low.u32 %v282
        %v284 = vextract.high.u32 %v282
        %v285 = vmul.u32 %v278, %v269
        %v286 = vadd.s32 %v281, %v283
        %vm287 = vc.u32 %v281, %v283
        %v288 = vadd.s32 %v284, 1
        %v289 = vsel %vm287, %v288, %v284
        %v290 = vadd.s32 %v285, %v289
        %v291 = vadd.s32 %v290, 536870912
        %v292 = vshrl.u32 %v291, 30
        %v293 = vshll.u32 %v292, 30
        %v294 = vsub.s32 %v290, %v293
        %vm295 = vcmp.lt.s32.totalorder %v294, 0
        %v296 = vsub.s32 0, %v294
        %v297 = vsel %vm295, %v296, %v294
        %v298 = vclz %v297
        %v299 = vsub.s32 %v298, 2
        %vm300 = vcmp.gt.s32.totalorder 0, %v299
        %v301 = vsel %vm300, 0, %v299
        %v302 = vsub.s32 32, %v301
        %v303 = vshll.u32 %v294, %v301
        %v304 = vshrl.u32 %v286, %v302
        %v305 = vor.u32 %v303, %v304
        %v306 = vsub.s32 4294967266, %v301
        %v307 = vadd.s32 %v306, 127
        %v308 = vshll.u32 %v307, 23
        %v309 = vor.u32 4788187, %v308
        %v310 = vand.u32 2147483647, %v309
        %v312 = vcvt.s32.f32 %v305
        %v313 = vmul.f32 %v312, %v310
        %v314 = vxor.u32 %v313, 2147483648
        %v315 = vsel %vm232, %v314, %v313
        %v316 = vsub.s32 4, %v292
        %v317 = vsel %vm232, %v316, %v292
        %v318 = vsel %vm231, %v212, %v315
        %v319 = vsel %vm231, 0, %v317
        %v320 = vcosq.f32.pop %v318
        %v321 = vsinq.f32.pop %v318
        %vm322 = vweird.f32 %v212
        %v323 = vand.u32 %v319, 3
        %vm324 = vcmp.lt.s32.totalorder %v323, 2
        %vm325 = vcmp.eq.s32.totalorder %v323, 0
        %v326 = vxor.u32 %v321, 2147483648
        %v327 = vsel %vm325, %v320, %v326
        %vm328 = vcmp.eq.s32.totalorder %v323, 2
        %v329 = vxor.u32 %v320, 2147483648
        %v330 = vsel %vm328, %v329, %v321
        %v331 = vsel %vm324, %v327, %v330
        %v332 = vsel %vm322, nan, %v331
        %v333 = vand.u32 2147483647, %v212
        %vm334 = vcmp.le.f32.partialorder %v333, 0.7853982
        %vm335 = vcmp.lt.s32.totalorder %v212, 0
        %v336 = vand.u32 %v212, 2139095040
        %v337 = vshrl.u32 %v336, 23
        %v338 = vsub.s32 %v337, 127
        %v339 = vand.u32 2147483647, %v212
        %v340 = vand.u32 %v339, 8388607
        %v341 = vor.u32 %v340, 8388608
        %v342 = vsub.s32 0, %v341
        %v343 = vadd.s32 %v338, 1
        %vm344 = vcmp.gt.s32.totalorder %v343, 0
        %v345 = vsel %vm344, %v343, 0
        %v346 = vshrl.u32 %v345, 5
        %v347 = vand.u32 %v345, 31
        %v348 = vsub.s32 32, %v347
        %v349 = vshrl.u32 683565275, %v348
        %v350 = vshll.u32 683565275, %v347
        %v351 = vshrl.u32 2475754826, %v348
        %v352 = vor.u32 %v350, %v351
        %v353 = vshll.u32 2475754826, %v347
        %v354 = vshrl.u32 2131351028, %v348
        %v355 = vor.u32 %v353, %v354
        %v356 = vshll.u32 2131351028, %v347
        %v357 = vshrl.u32 2102212464, %v348
        %v358 = vor.u32 %v356, %v357
        %v359 = vshll.u32 2102212464, %v347
        %v360 = vshrl.u32 920167782, %v348
        %v361 = vor.u32 %v359, %v360
        %v362 = vshll.u32 920167782, %v347
        %v363 = vshrl.u32 1326507024, %v348
        %v364 = vor.u32 %v362, %v363
        %vm365 = vcmp.lt.s32.totalorder %v346, 1
        %vm366 = vcmp.lt.s32.totalorder %v346, 2
        %vm367 = vcmp.lt.s32.totalorder %v346, 3
        %vm368 = vcmp.lt.s32.totalorder %v346, 4
        %v369 = vsel %vm365, %v349, %v352
        %v370 = vsel %vm368, %v358, 2102212464
        %v371 = vsel %vm367, %v355, %v370
        %v372 = vsel %vm366, %v369, %v371
        %v373 = vsel %vm365, %v352, %v355
        %v374 = vsel %vm368, %v361, 920167782
        %v375 = vsel %vm367, %v358, %v374
        %v376 = vsel %vm366, %v373, %v375
        %v377 = vsel %vm365, %v355, %v358
        %v378 = vsel %vm368, %v364, 1326507024
        %v379 = vsel %vm367, %v361, %v378
        %v380 = vsel %vm366, %v377, %v379
        %v381 = vshll.u32 %v341, 8
        %v382 = vmul.u32.u64.compose %v381, %v380
        %v383 = vextract.low.u32 %v382
        %v384 = vextract.high.u32 %v382
        %v385 = vmul.u32.u64.compose %v381, %v376
        %v386 = vextract.low.u32 %v385
        %v387 = vextract.high.u32 %v385
        %v388 = vmul.u32 %v381, %v372
        %v389 = vadd.s32 %v384, %v386
        %vm390 = vc.u32 %v384, %v386
        %v391 = vadd.s32 %v387, 1
        %v392 = vsel %vm390, %v391, %v387
        %v393 = vadd.s32 %v388, %v392
        %v394 = vadd.s32 %v393, 536870912
        %v395 = vshrl.u32 %v394, 30
        %v396 = vshll.u32 %v395, 30
        %v397 = vsub.s32 %v393, %v396
        %vm398 = vcmp.lt.s32.totalorder %v397, 0
        %v399 = vsub.s32 0, %v397
        %v400 = vsel %vm398, %v399, %v397
        %v401 = vclz %v400
        %v402 = vsub.s32 %v401, 2
        %vm403 = vcmp.gt.s32.totalorder 0, %v402
        %v404 = vsel %vm403, 0, %v402
        %v405 = vsub.s32 32, %v404
        %v406 = vshll.u32 %v397, %v404
        %v407 = vshrl.u32 %v389, %v405
        %v408 = vor.u32 %v406, %v407
        %v409 = vsub.s32 4294967266, %v404
        %v410 = vadd.s32 %v409, 127
        %v411 = vshll.u32 %v410, 23
        %v412 = vor.u32 4788187, %v411
        %v413 = vand.u32 2147483647, %v412
        %v415 = vcvt.s32.f32 %v408
        %v416 = vmul.f32 %v415, %v413
        %v417 = vxor.u32 %v416, 2147483648
        %v418 = vsel %vm335, %v417, %v416
        %v419 = vsub.s32 4, %v395
        %v420 = vsel %vm335, %v419, %v395
        %v421 = vsel %vm334, %v212, %v418
        %v422 = vsel %vm334, 0, %v420
        %v423 = vcosq.f32.pop %v421
        %v424 = vsinq.f32.pop %v421
        %vm425 = vweird.f32 %v212
        %v426 = vadd.s32 %v422, 3
        %v427 = vand.u32 %v426, 3
        %vm428 = vcmp.lt.s32.totalorder %v427, 2
        %vm429 = vcmp.eq.s32.totalorder %v427, 0
        %v430 = vxor.u32 %v424, 2147483648
        %v431 = vsel %vm429, %v423, %v430
        %vm432 = vcmp.eq.s32.totalorder %v427, 2
        %v433 = vxor.u32 %v423, 2147483648
        %v434 = vsel %vm432, %v433, %v424
        %v435 = vsel %vm428, %v431, %v434
        %v436 = vsel %vm425, nan, %v435
        %v437 = vsel %vm229, %v332, %v436
        %438 = vst [vmem:[%s134] sm:$0xff] %v437
        %s439 = sand.u32 %s71, 1
        %s440 = scalar_lea.sflag [#allocation3], %s439
        %s441 = sand.u32 %s71, 1
        %s442 = smul.addr %s441, 8
        %s443 = scalar_lea.vmem [#allocation2], %s442
        // Predicated region
        $region29: #{tpu_custom_call.1} parent=27 // pred_check
          %p444 = pneg %p81
        $region30: #{tpu_custom_call.1} parent=27 // pred_check_branch
          %446 = sbr.rel (%p444) target = $region32
        $region31: #{tpu_custom_call.1} parent=27 // pred_region
          %s448 = ssub.s32 128, 128
          %449 = vsyncadd %s440, %s448
          %s450 = smul.addr %s16, 128
          %s451 = scalar_lea.hbm %s2, %s450
          %s453 = sshll.u32 %s443, 4
          %s454 = int_to_ptr.vmem [resolvable:$true] %s453
          %456 = dma.vmem_to_hbm [thread:$0]  %s454, 128, %s451, %s440
        $region32: #{tpu_custom_call.1} parent=27 // pred_fallthru
          _
      $region28: #{tpu_custom_call.1} parent=5 // pred_fallthru
        _
      %p457 = scmp.le.s32.totalorder 2, %s11
      // Predicated region
      $region33: #{tpu_custom_call.1} parent=5 // pred_check
        %p458 = pneg %p457
      $region34: #{tpu_custom_call.1} parent=5 // pred_check_branch
        %460 = sbr.rel (%p458) target = $region36
      $region35: #{tpu_custom_call.1} parent=5 // pred_region
        %s461 = ssub.s32 %s11, 2
        // Predicated region
        $region37: #{tpu_custom_call.1} parent=35 // pred_check
          %p462 = pneg %p87
        $region38: #{tpu_custom_call.1} parent=35 // pred_check_branch
          %464 = sbr.rel (%p462) target = $region40
        $region39: #{tpu_custom_call.1} parent=35 // pred_region
          %s465 = sand.u32 %s72, 1
          %s466 = scalar_lea.sflag [#allocation3], %s465
          %s467 = sand.u32 %s72, 1
          %s468 = smul.addr %s467, 8
          %s469 = scalar_lea.vmem [#allocation2], %s468
          %470 = dma.done %s466, 128
        $region40: #{tpu_custom_call.1} parent=35 // pred_fallthru
          _
      $region36: #{tpu_custom_call.1} parent=5 // pred_fallthru
        _
    $region6: #{tpu_custom_call.1} parent=1 // loop_footer
      %s15 = sadd.s32 1, %s11
    $region7: #{tpu_custom_call.1} parent=1 // loop_footer_branch
      %10 = sbr.rel target = $region3
    $region8: #{tpu_custom_call.1} parent=1 // loop_exit
      _
    %471 = vsyncpa [#allocation3], 1
    %s472 = scalar_lea.sflag [#allocation3], 1
    %473 = vsyncpa %s472, 1

</llo_original>
